<compile_context>
chip_gen: v6e
topology: v6e:2x2x1
jax: 0.10.0
libtpu: 0.0.40
codegen_flags: <defaults>
</compile_context>

<pallas_src>
import functools

import jax
import jax.numpy as jnp
from jax.experimental import pallas as pl
from jax.experimental.pallas import tpu as pltpu

LANE = 128
SUBLANE = 8
NEG_INF = -1e30  # finite "-inf" for masking padded logit columns


def _round_up(x, m):
    return (x + m - 1) // m * m


def rnn_seq_kernel(x_ref, h0_ref, wx_ref, wh_ref, b_ref,
                   out_ref, hid_ref, *, h_pad):
    """One timestep of the fused RNN sequence (grid axis 0 = time)."""
    t = pl.program_id(0)

    # Initialize the resident hidden-state accumulator from h0 on the first step.
    @pl.when(t == 0)
    def _():
        hid_ref[...] = h0_ref[...]

    x = x_ref[0]                      # (Bp, I)    current timestep input
    h_prev = hid_ref[...]             # (Bp, Hpad) VMEM-resident recurrent state

    # Fused [i2h | i2o] matmul, split along K into x-part and h-part
    # (avoids materializing cat((x, h), 1)).  Result layout: [hidden | logits].
    acc = (jnp.dot(x, wx_ref[...], preferred_element_type=jnp.float32)
           + jnp.dot(h_prev, wh_ref[...], preferred_element_type=jnp.float32)
           + b_ref[...])              # (Bp, Hpad + Opad)

    new_h = acc[:, :h_pad]            # lane-aligned slice (Hpad % 128 == 0)
    logits = acc[:, h_pad:]           # padded columns carry NEG_INF bias

    # Numerically stable log-softmax over dim=1; padded columns contribute exp()=0.
    m = jnp.max(logits, axis=1, keepdims=True)
    shifted = logits - m
    lse = jnp.log(jnp.sum(jnp.exp(shifted), axis=1, keepdims=True))

    out_ref[0] = (shifted - lse).astype(out_ref.dtype)
    hid_ref[...] = new_h.astype(hid_ref.dtype)


def prepare_params(w_i2h, b_i2h, w_i2o, b_i2o, input_size):
    """One-time parameter prep: transpose, fuse i2h/i2o, pad to lane multiples.

    nn.Linear layout: W (out_features, in_features), b (out_features,).
    """
    H, C = w_i2h.shape
    O = w_i2o.shape[0]
    I = input_size
    assert C == I + H, "i2h weight must have in_features == input_size + hidden_size"

    Hp = _round_up(H, LANE)
    Op = _round_up(O, LANE)
    N = Hp + Op

    wih_t = w_i2h.T.astype(jnp.float32)   # (C, H)
    wio_t = w_i2o.T.astype(jnp.float32)   # (C, O)

    # x-part of the fused weight (rows 0..I of the transposed weights).
    wx = jnp.zeros((I, N), jnp.float32)
    wx = wx.at[:, :H].set(wih_t[:I])
    wx = wx.at[:, Hp:Hp + O].set(wio_t[:I])

    # h-part, zero-padded along K so padded hidden lanes contribute nothing.
    wh = jnp.zeros((Hp, N), jnp.float32)
    wh = wh.at[:H, :H].set(wih_t[I:])
    wh = wh.at[:H, Hp:Hp + O].set(wio_t[I:])

    # Fused bias: hidden pad -> 0, logit pad -> NEG_INF (masks log-softmax for free).
    b = jnp.zeros((1, N), jnp.float32)
    b = b.at[0, :H].set(b_i2h.astype(jnp.float32))
    b = b.at[0, Hp:Hp + O].set(b_i2o.astype(jnp.float32))
    b = b.at[0, Hp + O:].set(NEG_INF)

    return dict(wx=wx, wh=wh, b=b, I=I, H=H, O=O, Hp=Hp, Op=Op)


def rnn_sequence_forward(xs, h0, params):
    """Run the RNN over a sequence in a single fused kernel.

    xs: (T, B, I), h0: (B, H).
    Returns (log_probs (T, B, O), final_hidden (B, H)); each step's output is
    exactly the PyTorch module's forward applied to (xs[t], hidden_t).
    """
    T, B, I = xs.shape
    H, O = params["H"], params["O"]
    Hp, Op = params["Hp"], params["Op"]
    N = Hp + Op
    Bp = _round_up(B, SUBLANE)        # sublane-dense batch rows

    xs_p = jnp.zeros((T, Bp, I), jnp.float32).at[:, :B, :].set(
        xs.astype(jnp.float32))
    h0_p = jnp.zeros((Bp, Hp), jnp.float32).at[:B, :H].set(
        h0.astype(jnp.float32))

    kernel = functools.partial(rnn_seq_kernel, h_pad=Hp)
    const2 = lambda t: (0, 0)

    outs_p, h_final_p = pl.pallas_call(
        kernel,
        grid=(T,),
        in_specs=[
            pl.BlockSpec((1, Bp, I), lambda t: (t, 0, 0)),   # x_t (small per-step DMA)
            pl.BlockSpec((Bp, Hp), const2),                  # h0 (read only at t == 0)
            pl.BlockSpec((I, N), const2),                    # Wx  (VMEM-resident)
            pl.BlockSpec((Hp, N), const2),                   # Wh  (VMEM-resident)
            pl.BlockSpec((1, N), const2),                    # bias (VMEM-resident)
        ],
        out_specs=[
            pl.BlockSpec((1, Bp, Op), lambda t: (t, 0, 0)),  # per-step log-probs
            pl.BlockSpec((Bp, Hp), const2),                  # final hidden (accumulator)
        ],
        out_shape=[
            jax.ShapeDtypeStruct((T, Bp, Op), jnp.float32),
            jax.ShapeDtypeStruct((Bp, Hp), jnp.float32),
        ],
        input_output_aliases={1: 1},   # final hidden reuses h0's padded HBM buffer
        compiler_params=pltpu.CompilerParams(
            dimension_semantics=("arbitrary",)),             # time = sequential carry
    )(xs_p, h0_p, params["wx"], params["wh"], params["b"])

    return outs_p[:, :B, :O], h_final_p[:B, :H]


def rnn_forward(x, h, params):
    """Single-step forward matching the PyTorch module: returns (output, hidden)."""
    out, new_h = rnn_sequence_forward(x[None], h, params)
    return out[0], new_h


def reference_sequence(xs, h0, w_i2h, b_i2h, w_i2o, b_i2o):
    """Pure-JAX reference: the PyTorch module's forward applied step by step."""
    h = h0
    outs = []
    for t in range(xs.shape[0]):
        combined = jnp.concatenate([xs[t], h], axis=1)
        h = combined @ w_i2h.T + b_i2h
        logits = combined @ w_i2o.T + b_i2o
        outs.append(jax.nn.log_softmax(logits, axis=1))
    return jnp.stack(outs, axis=0), h


if __name__ == "__main__":
    # Small shapes consistent with the module's forward (char-RNN style).
    T, B = 8, 2
    input_size, hidden_size, output_size = 16, 32, 8

    key = jax.random.PRNGKey(0)
    k_x, k_h, k_wih, k_bih, k_wio, k_bio = jax.random.split(key, 6)

    xs = jax.random.normal(k_x, (T, B, input_size), dtype=jnp.float32)
    h0 = jax.random.normal(k_h, (B, hidden_size), dtype=jnp.float32)

    # Deterministic parameters (nn.Linear shapes: W (out, in), b (out,)).
    fan_in = input_size + hidden_size
    bound = 1.0 / (fan_in ** 0.5)
    w_i2h = jax.random.uniform(k_wih, (hidden_size, fan_in),
                               minval=-bound, maxval=bound, dtype=jnp.float32)
    b_i2h = jax.random.uniform(k_bih, (hidden_size,),
                               minval=-bound, maxval=bound, dtype=jnp.float32)
    w_i2o = jax.random.uniform(k_wio, (output_size, fan_in),
                               minval=-bound, maxval=bound, dtype=jnp.float32)
    b_i2o = jax.random.uniform(k_bio, (output_size,),
                               minval=-bound, maxval=bound, dtype=jnp.float32)

    # One-time parameter prep (hoisted out of the per-call path).
    params = prepare_params(w_i2h, b_i2h, w_i2o, b_i2o, input_size)

    # Fused-sequence kernel.
    outs, h_final = rnn_sequence_forward(xs, h0, params)
    jax.block_until_ready((outs, h_final))

    ref_outs, ref_h = reference_sequence(xs, h0, w_i2h, b_i2h, w_i2o, b_i2o)
    assert jnp.allclose(outs, ref_outs, atol=1e-4, rtol=1e-4), "output mismatch"
    assert jnp.allclose(h_final, ref_h, atol=1e-4, rtol=1e-4), "hidden mismatch"

    # Single-step API == the PyTorch module's forward signature.
    out1, h1 = rnn_forward(xs[0], h0, params)
    jax.block_until_ready((out1, h1))
    assert jnp.allclose(out1, ref_outs[0], atol=1e-4, rtol=1e-4), "single-step mismatch"

    print("KERNEL_OK")
</pallas_src>

<mosaic_0001>
module attributes {stable_mosaic.version = 11 : i64} {
  func.func @rnn_seq_kernel(%arg0: i32, %arg1: memref<1x8x16xf32, #tpu.memory_space<vmem>>, %arg2: memref<8x128xf32, #tpu.memory_space<vmem>>, %arg3: memref<16x256xf32, #tpu.memory_space<vmem>>, %arg4: memref<128x256xf32, #tpu.memory_space<vmem>>, %arg5: memref<1x256xf32, #tpu.memory_space<vmem>>, %arg6: memref<1x8x128xf32, #tpu.memory_space<vmem>>, %arg7: memref<8x128xf32, #tpu.memory_space<vmem>>) attributes {dimension_semantics = [#tpu.dimension_semantics<arbitrary>], iteration_bounds = array<i64: 8>, scalar_prefetch = 0 : i64, scratch_operands = 0 : i64, tpu.core_type = #tpu.core_type<tc>, window_params = [{transform_indices = @transform_0, window_bounds = array<i64: 1, 8, 16>}, {pipeline_mode = #tpu.pipeline_mode<synchronous>, transform_indices = @transform_1, window_bounds = array<i64: 8, 128>}, {pipeline_mode = #tpu.pipeline_mode<synchronous>, transform_indices = @transform_2, window_bounds = array<i64: 16, 256>}, {pipeline_mode = #tpu.pipeline_mode<synchronous>, transform_indices = @transform_3, window_bounds = array<i64: 128, 256>}, {pipeline_mode = #tpu.pipeline_mode<synchronous>, transform_indices = @transform_4, window_bounds = array<i64: 1, 256>}, {transform_indices = @transform_5, window_bounds = array<i64: 1, 8, 128>}, {pipeline_mode = #tpu.pipeline_mode<synchronous>, transform_indices = @transform_6, window_bounds = array<i64: 8, 128>}]} {
    %c0_i32 = arith.constant 0 : i32
    %0 = arith.cmpi eq, %arg0, %c0_i32 : i32
    %1 = arith.extui %0 : i1 to i32
    %c0_i32_0 = arith.constant 0 : i32
    %2 = arith.cmpi ne, %1, %c0_i32_0 : i32
    scf.if %2 {
      %c0_19 = arith.constant 0 : index
      %c0_20 = arith.constant 0 : index
      %30 = vector.load %arg2[%c0_19, %c0_20] : memref<8x128xf32, #tpu.memory_space<vmem>>, vector<8x128xf32>
      %c0_21 = arith.constant 0 : index
      %c0_22 = arith.constant 0 : index
      %31 = vector.load %arg7[%c0_21, %c0_22] : memref<8x128xf32, #tpu.memory_space<vmem>>, vector<8x128xf32>
      tpu.vector_store %arg7[%c0_21, %c0_22], %30 {strides = array<i32>} : memref<8x128xf32, #tpu.memory_space<vmem>>, vector<8x128xf32>,
    } else {
    }
    %c0 = arith.constant 0 : index
    %c0_1 = arith.constant 0 : index
    %c0_2 = arith.constant 0 : index
    %3 = vector.load %arg1[%c0, %c0_1, %c0_2] : memref<1x8x16xf32, #tpu.memory_space<vmem>>, vector<1x8x16xf32>
    %4 = vector.shape_cast %3 : vector<1x8x16xf32> to vector<8x16xf32>
    %c0_3 = arith.constant 0 : index
    %c0_4 = arith.constant 0 : index
    %5 = vector.load %arg7[%c0_3, %c0_4] : memref<8x128xf32, #tpu.memory_space<vmem>>, vector<8x128xf32>
    %c0_5 = arith.constant 0 : index
    %c0_6 = arith.constant 0 : index
    %6 = vector.load %arg3[%c0_5, %c0_6] : memref<16x256xf32, #tpu.memory_space<vmem>>, vector<16x256xf32>
    %cst = arith.constant dense<0.000000e+00> : vector<8x256xf32>
    %7 = tpu.matmul %4, %6, %cst {dimension_numbers = #tpu.dot_dimension_numbers<[1], [0], [0], [1], [0, 0, 1, 1], [], []>} : vector<8x16xf32>, vector<16x256xf32>, vector<8x256xf32> -> vector<8x256xf32>
    %c0_7 = arith.constant 0 : index
    %c0_8 = arith.constant 0 : index
    %8 = vector.load %arg4[%c0_7, %c0_8] : memref<128x256xf32, #tpu.memory_space<vmem>>, vector<128x256xf32>
    %cst_9 = arith.constant dense<0.000000e+00> : vector<8x256xf32>
    %9 = tpu.matmul %5, %8, %cst_9 {dimension_numbers = #tpu.dot_dimension_numbers<[1], [0], [0], [1], [0, 0, 1, 1], [], []>} : vector<8x128xf32>, vector<128x256xf32>, vector<8x256xf32> -> vector<8x256xf32>
    %10 = arith.addf %7, %9 : vector<8x256xf32>
    %c0_10 = arith.constant 0 : index
    %c0_11 = arith.constant 0 : index
    %11 = vector.load %arg5[%c0_10, %c0_11] : memref<1x256xf32, #tpu.memory_space<vmem>>, vector<1x256xf32>
    %12 = vector.broadcast %11 : vector<1x256xf32> to vector<8x256xf32>
    %13 = arith.addf %10, %12 : vector<8x256xf32>
    %14 = vector.extract_strided_slice %13 {offsets = [0, 0], sizes = [8, 128], strides = [1, 1]} : vector<8x256xf32> to vector<8x128xf32>
    %15 = vector.extract_strided_slice %13 {offsets = [0, 128], sizes = [8, 128], strides = [1, 1]} : vector<8x256xf32> to vector<8x128xf32>
    %cst_12 = arith.constant dense<0xFF800000> : vector<8xf32>
    %16 = vector.multi_reduction <maximumf>, %15, %cst_12 [1] : vector<8x128xf32> to vector<8xf32>
    %17 = vector.shape_cast %16 : vector<8xf32> to vector<8x1xf32>
    %18 = vector.broadcast %17 : vector<8x1xf32> to vector<8x128xf32>
    %19 = arith.subf %15, %18 : vector<8x128xf32>
    %20 = math.exp %19 : vector<8x128xf32>
    %cst_13 = arith.constant dense<0.000000e+00> : vector<8xf32>
    %21 = vector.multi_reduction <add>, %20, %cst_13 [1] : vector<8x128xf32> to vector<8xf32>
    %22 = vector.shape_cast %21 : vector<8xf32> to vector<8x1xf32>
    %23 = math.log %22 : vector<8x1xf32>
    %24 = vector.broadcast %23 : vector<8x1xf32> to vector<8x128xf32>
    %25 = arith.subf %19, %24 : vector<8x128xf32>
    %c0_14 = arith.constant 0 : index
    %c0_15 = arith.constant 0 : index
    %c0_16 = arith.constant 0 : index
    %26 = vector.load %arg6[%c0_14, %c0_15, %c0_16] : memref<1x8x128xf32, #tpu.memory_space<vmem>>, vector<1x8x128xf32>
    %27 = vector.shape_cast %26 : vector<1x8x128xf32> to vector<8x128xf32>
    %28 = vector.shape_cast %25 : vector<8x128xf32> to vector<1x8x128xf32>
    tpu.vector_store %arg6[%c0_14, %c0_15, %c0_16], %28 {strides = array<i32>} : memref<1x8x128xf32, #tpu.memory_space<vmem>>, vector<1x8x128xf32>,
    %c0_17 = arith.constant 0 : index
    %c0_18 = arith.constant 0 : index
    %29 = vector.load %arg7[%c0_17, %c0_18] : memref<8x128xf32, #tpu.memory_space<vmem>>, vector<8x128xf32>
    tpu.vector_store %arg7[%c0_17, %c0_18], %14 {strides = array<i32>} : memref<8x128xf32, #tpu.memory_space<vmem>>, vector<8x128xf32>,
    return
  }
  func.func @transform_0(%arg0: i32) -> (i32, i32, i32) {
    %c0_i32 = arith.constant 0 : i32
    %c0_i32_0 = arith.constant 0 : i32
    %c0_i32_1 = arith.constant 0 : i32
    return %arg0, %c0_i32, %c0_i32_0 : i32, i32, i32
  }
  func.func @transform_1(%arg0: i32) -> (i32, i32) {
    %c0_i32 = arith.constant 0 : i32
    %c0_i32_0 = arith.constant 0 : i32
    %c0_i32_1 = arith.constant 0 : i32
    return %c0_i32, %c0_i32_0 : i32, i32
  }
  func.func @transform_2(%arg0: i32) -> (i32, i32) {
    %c0_i32 = arith.constant 0 : i32
    %c0_i32_0 = arith.constant 0 : i32
    %c0_i32_1 = arith.constant 0 : i32
    return %c0_i32, %c0_i32_0 : i32, i32
  }
  func.func @transform_3(%arg0: i32) -> (i32, i32) {
    %c0_i32 = arith.constant 0 : i32
    %c0_i32_0 = arith.constant 0 : i32
    %c0_i32_1 = arith.constant 0 : i32
    return %c0_i32, %c0_i32_0 : i32, i32
  }
  func.func @transform_4(%arg0: i32) -> (i32, i32) {
    %c0_i32 = arith.constant 0 : i32
    %c0_i32_0 = arith.constant 0 : i32
    %c0_i32_1 = arith.constant 0 : i32
    return %c0_i32, %c0_i32_0 : i32, i32
  }
  func.func @transform_5(%arg0: i32) -> (i32, i32, i32) {
    %c0_i32 = arith.constant 0 : i32
    %c0_i32_0 = arith.constant 0 : i32
    %c0_i32_1 = arith.constant 0 : i32
    return %arg0, %c0_i32, %c0_i32_0 : i32, i32, i32
  }
  func.func @transform_6(%arg0: i32) -> (i32, i32) {
    %c0_i32 = arith.constant 0 : i32
    %c0_i32_0 = arith.constant 0 : i32
    %c0_i32_1 = arith.constant 0 : i32
    return %c0_i32, %c0_i32_0 : i32, i32
  }
}

</mosaic_0001>

<llo_original>
// kernel: tpu_custom_call.1
$region0: #{tpu_custom_call.1}
  #allocation0 [shape = 'u32[]', space=smem, size = 0x4, offset = 0x4, fixed_abs, tag = 'smem constant byte address 0x4 - core index']
  #allocation1 [shape = 'u32[144,128]{1,0:T(1,128)}', space=vmem, size = 0x12000, scoped, tag = 'internal scratch']
  %s0 = inlined_call_operand.hbm [shape: f32[8,8,16], index: 0, kind: input, shape index: {}]
  %s1 = inlined_call_operand.hbm [shape: f32[8,128], index: 1, kind: input, shape index: {}, may-alias: {1,6}]
  %s2 = inlined_call_operand.hbm [shape: f32[16,256], index: 2, kind: input, shape index: {}]
  %s3 = inlined_call_operand.hbm [shape: f32[128,256], index: 3, kind: input, shape index: {}]
  %s4 = inlined_call_operand.vmem [shape: f32[1,256], index: 4, kind: input, shape index: {}]
  %s5 = inlined_call_operand.hbm [shape: f32[8,8,128], index: 5, kind: output, shape index: {0}]
  %s6 = inlined_call_operand.hbm [shape: f32[8,128], index: 6, kind: output, shape index: {1}, may-alias: {1,6}]
  %7 = xla_tuple %s5, %s6
  %s8 = sld [smem:[#allocation0]]
  $region81: #{tpu_custom_call.1} parent=0
    _
  %s10 = ssub.s32 1, %s8
  %s11 = scalar_select 0, %s10, %s8
  $region1: #{tpu_custom_call.1} parent=0
    #allocation2 [shape = 'u8[8192]{0}', space=vmem, size = 0x2000, scoped, tag = 'input window, operand 0']
    #allocation3 [shape = 's32[2]{0}', space=sflag, size = 0x8, scoped, tag = 'scoped memory for tpu_custom_call.1']
    #allocation4 [shape = 's32[2]{0}', space=sflag, size = 0x8, scoped, tag = 'scoped memory for tpu_custom_call.1']
    #allocation5 [shape = 'u8[4096]{0}', space=vmem, size = 0x1000, scoped, tag = 'input window, operand 1, single buffered']
    #allocation6 [shape = 's32[1]{0}', space=sflag, size = 0x4, scoped, tag = 'scoped memory for tpu_custom_call.1']
    #allocation7 [shape = 'u8[16384]{0}', space=vmem, size = 0x4000, scoped, tag = 'input window, operand 2, single buffered']
    #allocation8 [shape = 'u8[131072]{0}', space=vmem, size = 0x20000, scoped, tag = 'input window, operand 3, single buffered']
    #allocation9 [shape = 's32[1]{0}', space=sflag, size = 0x4, scoped, tag = 'scoped memory for tpu_custom_call.1']
    #allocation10 [shape = 'u8[8192]{0}', space=vmem, size = 0x2000, scoped, tag = 'output window, operand 0']
    #allocation11 [shape = 'u8[4096]{0}', space=vmem, size = 0x1000, scoped, tag = 'output window, operand 1, single buffered']
    #allocation12 [shape = 's32[1]{0}', space=sflag, size = 0x4, scoped, tag = 'scoped memory for tpu_custom_call.1']
    %12 = vsyncpa [#allocation3], 0
    %s13 = scalar_lea.sflag [#allocation3], 1
    %14 = vsyncpa %s13, 0
    %15 = vsyncpa [#allocation6], 0
    %16 = vsyncpa [#allocation9], 0
    %17 = vsyncpa [#allocation4], 0
    %s18 = scalar_lea.sflag [#allocation4], 1
    %19 = vsyncpa %s18, 0
    %20 = vsyncpa [#allocation12], 0
    loop: start=0, step=1, limit=10
    $region2: #{tpu_custom_call.1} parent=1 // loop_pre_header
      _
    $region3: #{tpu_custom_call.1} parent=1 // loop_header
      %s22 = sphi 0, %s26
      %p23 = scmp.ge.s32.totalorder %s22, 10
      %s32 = sphi 0, %s34
      %s35 = sphi 0, %s32
      %s36 = sphi 0, %s35
      %s52 = sphi 0, %s36
      %s56 = sphi 0, %s56
      %s58 = sphi 0, %s56
      %s59 = sphi 0, %s58
      %s73 = sphi 0, %s59
      %s77 = sphi 0, %s77
      %s79 = sphi 0, %s77
      %s80 = sphi 0, %s79
      %s94 = sphi 0, %s80
      %s98 = sphi 0, %s98
      %s100 = sphi 0, %s98
      %s101 = sphi 0, %s100
      %s115 = sphi 0, %s101
      %s119 = sphi 0, %s119
      %s121 = sphi 0, %s119
      %s122 = sphi 0, %s121
      %s136 = sphi 0, %s122
      %s142 = sphi 0, %s144
      %s145 = sphi 0, %s142
      %s146 = sphi 0, %s145
      %s162 = sphi 0, %s146
      %s166 = sphi 0, %s166
      %s168 = sphi 0, %s166
      %s169 = sphi 0, %s168
      %s183 = sphi 0, %s169
    $region4: #{tpu_custom_call.1} parent=1 // loop_header_branch
      %25 = sbr.rel (%p23) target = $region8
    $region5: #{tpu_custom_call.1} parent=1 // loop_body
      %s27 = ssub.s32 %s22, 1
      %s28 = ssub.s32 %s22, 2
      %s29 = sadd.s32 %s22, 1
      %s30 = ssub.s32 %s22, %s29
      %p31 = scmp.eq.s32.totalorder %s30, 0
      %s33 = sadd.s32 %s32, 1
      %s34 = scalar_select %p31, %s32, %s33
      %p37 = pneg %p31
      %p38 = scmp.eq.s32.totalorder %s22, 7
      %p39 = por %p37, %p38
      %p40 = scmp.ne.s32.totalorder %s32, %s35
      %p41 = scmp.eq.s32.totalorder %s22, 0
      %p42 = por %p40, %p41
      %p43 = scmp.ne.s32.totalorder %s32, %s35
      %p44 = scmp.eq.s32.totalorder %s27, 7
      %p45 = por %p43, %p44
      %p46 = scmp.ne.s32.totalorder %s35, %s36
      %p47 = scmp.eq.s32.totalorder %s27, 0
      %p48 = por %p46, %p47
      %p49 = scmp.ne.s32.totalorder %s35, %s36
      %p50 = scmp.eq.s32.totalorder %s28, 7
      %p51 = por %p49, %p50
      %p53 = scmp.ne.s32.totalorder %s36, %s52
      %p54 = scmp.eq.s32.totalorder %s28, 0
      %p55 = por %p53, %p54
      %s57 = sadd.s32 %s56, 1
      %p60 = scmp.eq.s32.totalorder %s22, 7
      %p61 = scmp.ne.s32.totalorder %s56, %s58
      %p62 = scmp.eq.s32.totalorder %s22, 0
      %p63 = por %p61, %p62
      %p64 = scmp.ne.s32.totalorder %s56, %s58
      %p65 = scmp.eq.s32.totalorder %s27, 7
      %p66 = por %p64, %p65
      %p67 = scmp.ne.s32.totalorder %s58, %s59
      %p68 = scmp.eq.s32.totalorder %s27, 0
      %p69 = por %p67, %p68
      %p70 = scmp.ne.s32.totalorder %s58, %s59
      %p71 = scmp.eq.s32.totalorder %s28, 7
      %p72 = por %p70, %p71
      %p74 = scmp.ne.s32.totalorder %s59, %s73
      %p75 = scmp.eq.s32.totalorder %s28, 0
      %p76 = por %p74, %p75
      %s78 = sadd.s32 %s77, 1
      %p81 = scmp.eq.s32.totalorder %s22, 7
      %p82 = scmp.ne.s32.totalorder %s77, %s79
      %p83 = scmp.eq.s32.totalorder %s22, 0
      %p84 = por %p82, %p83
      %p85 = scmp.ne.s32.totalorder %s77, %s79
      %p86 = scmp.eq.s32.totalorder %s27, 7
      %p87 = por %p85, %p86
      %p88 = scmp.ne.s32.totalorder %s79, %s80
      %p89 = scmp.eq.s32.totalorder %s27, 0
      %p90 = por %p88, %p89
      %p91 = scmp.ne.s32.totalorder %s79, %s80
      %p92 = scmp.eq.s32.totalorder %s28, 7
      %p93 = por %p91, %p92
      %p95 = scmp.ne.s32.totalorder %s80, %s94
      %p96 = scmp.eq.s32.totalorder %s28, 0
      %p97 = por %p95, %p96
      %s99 = sadd.s32 %s98, 1
      %p102 = scmp.eq.s32.totalorder %s22, 7
      %p103 = scmp.ne.s32.totalorder %s98, %s100
      %p104 = scmp.eq.s32.totalorder %s22, 0
      %p105 = por %p103, %p104
      %p106 = scmp.ne.s32.totalorder %s98, %s100
      %p107 = scmp.eq.s32.totalorder %s27, 7
      %p108 = por %p106, %p107
      %p109 = scmp.ne.s32.totalorder %s100, %s101
      %p110 = scmp.eq.s32.totalorder %s27, 0
      %p111 = por %p109, %p110
      %p112 = scmp.ne.s32.totalorder %s100, %s101
      %p113 = scmp.eq.s32.totalorder %s28, 7
      %p114 = por %p112, %p113
      %p116 = scmp.ne.s32.totalorder %s101, %s115
      %p117 = scmp.eq.s32.totalorder %s28, 0
      %p118 = por %p116, %p117
      %s120 = sadd.s32 %s119, 1
      %p123 = scmp.eq.s32.totalorder %s22, 7
      %p124 = scmp.ne.s32.totalorder %s119, %s121
      %p125 = scmp.eq.s32.totalorder %s22, 0
      %p126 = por %p124, %p125
      %p127 = scmp.ne.s32.totalorder %s119, %s121
      %p128 = scmp.eq.s32.totalorder %s27, 7
      %p129 = por %p127, %p128
      %p130 = scmp.ne.s32.totalorder %s121, %s122
      %p131 = scmp.eq.s32.totalorder %s27, 0
      %p132 = por %p130, %p131
      %p133 = scmp.ne.s32.totalorder %s121, %s122
      %p134 = scmp.eq.s32.totalorder %s28, 7
      %p135 = por %p133, %p134
      %p137 = scmp.ne.s32.totalorder %s122, %s136
      %p138 = scmp.eq.s32.totalorder %s28, 0
      %p139 = por %p137, %p138
      %s140 = ssub.s32 %s22, %s29
      %p141 = scmp.eq.s32.totalorder %s140, 0
      %s143 = sadd.s32 %s142, 1
      %s144 = scalar_select %p141, %s142, %s143
      %p147 = pneg %p141
      %p148 = scmp.eq.s32.totalorder %s22, 7
      %p149 = por %p147, %p148
      %p150 = scmp.ne.s32.totalorder %s142, %s145
      %p151 = scmp.eq.s32.totalorder %s22, 0
      %p152 = por %p150, %p151
      %p153 = scmp.ne.s32.totalorder %s142, %s145
      %p154 = scmp.eq.s32.totalorder %s27, 7
      %p155 = por %p153, %p154
      %p156 = scmp.ne.s32.totalorder %s145, %s146
      %p157 = scmp.eq.s32.totalorder %s27, 0
      %p158 = por %p156, %p157
      %p159 = scmp.ne.s32.totalorder %s145, %s146
      %p160 = scmp.eq.s32.totalorder %s28, 7
      %p161 = por %p159, %p160
      %p163 = scmp.ne.s32.totalorder %s146, %s162
      %p164 = scmp.eq.s32.totalorder %s28, 0
      %p165 = por %p163, %p164
      %s167 = sadd.s32 %s166, 1
      %p170 = scmp.eq.s32.totalorder %s22, 7
      %p171 = scmp.ne.s32.totalorder %s166, %s168
      %p172 = scmp.eq.s32.totalorder %s22, 0
      %p173 = por %p171, %p172
      %p174 = scmp.ne.s32.totalorder %s166, %s168
      %p175 = scmp.eq.s32.totalorder %s27, 7
      %p176 = por %p174, %p175
      %p177 = scmp.ne.s32.totalorder %s168, %s169
      %p178 = scmp.eq.s32.totalorder %s27, 0
      %p179 = por %p177, %p178
      %p180 = scmp.ne.s32.totalorder %s168, %s169
      %p181 = scmp.eq.s32.totalorder %s28, 7
      %p182 = por %p180, %p181
      %p184 = scmp.ne.s32.totalorder %s169, %s183
      %p185 = scmp.eq.s32.totalorder %s28, 0
      %p186 = por %p184, %p185
      %p187 = scmp.le.s32.totalorder 1, %s22
      %p188 = scmp.lt.s32.totalorder %s22, 9
      %p189 = pnand %p187, %p188
      %p190 = pneg %p189
      // Predicated region
      $region9: #{tpu_custom_call.1} parent=5 // pred_check
        _
      $region10: #{tpu_custom_call.1} parent=5 // pred_check_branch
        %192 = sbr.rel (%p189) target = $region12
      $region11: #{tpu_custom_call.1} parent=5 // pred_region
        %s193 = ssub.s32 %s22, 1
        // Predicated region
        $region13: #{tpu_custom_call.1} parent=11 // pred_check
          %p194 = pneg %p69
        $region14: #{tpu_custom_call.1} parent=11 // pred_check_branch
          %196 = sbr.rel (%p194) target = $region16
        $region15: #{tpu_custom_call.1} parent=11 // pred_region
          %s198 = ssub.s32 128, 128
          %199 = vsyncadd [#allocation6], %s198
          %s201 = sshll.u32 [#allocation5], 4
          %s202 = int_to_ptr.vmem [resolvable:$true] %s201
          %204 = dma.hbm_to_vmem [thread:$0]  %s1, 128, %s202, [#allocation6]
        $region16: #{tpu_custom_call.1} parent=11 // pred_fallthru
          _
        // Predicated region
        $region17: #{tpu_custom_call.1} parent=11 // pred_check
          %p205 = pneg %p90
        $region18: #{tpu_custom_call.1} parent=11 // pred_check_branch
          %207 = sbr.rel (%p205) target = $region20
        $region19: #{tpu_custom_call.1} parent=11 // pred_region
          %s209 = ssub.s32 512, 512
          %210 = vsyncadd [#allocation6], %s209
          %s211 = sshll.u32 [#allocation7], 4
          %s212 = int_to_ptr.vmem [resolvable:$true] %s211
          %217 = dma.hbm_to_vmem [thread:$0]  %s2, 512, %s212, [#allocation6], 256, 256, 16
        $region20: #{tpu_custom_call.1} parent=11 // pred_fallthru
          _
        // Predicated region
        $region21: #{tpu_custom_call.1} parent=11 // pred_check
          %p218 = pneg %p111
        $region22: #{tpu_custom_call.1} parent=11 // pred_check_branch
          %220 = sbr.rel (%p218) target = $region24
        $region23: #{tpu_custom_call.1} parent=11 // pred_region
          %s222 = ssub.s32 4096, 4096
          %223 = vsyncadd [#allocation9], %s222
          %s224 = sshll.u32 [#allocation8], 4
          %s225 = int_to_ptr.vmem [resolvable:$true] %s224
          %230 = dma.hbm_to_vmem [thread:$0]  %s3, 4096, %s225, [#allocation9], 256, 256, 16
        $region24: #{tpu_custom_call.1} parent=11 // pred_fallthru
          _
        // Predicated region
        $region25: #{tpu_custom_call.1} parent=11 // pred_check
          %p231 = pneg %p132
        $region26: #{tpu_custom_call.1} parent=11 // pred_check_branch
          %233 = sbr.rel (%p231) target = $region28
        $region27: #{tpu_custom_call.1} parent=11 // pred_region
          _
        $region28: #{tpu_custom_call.1} parent=11 // pred_fallthru
          _
      $region12: #{tpu_custom_call.1} parent=5 // pred_fallthru
        _
      %p234 = scmp.lt.s32.totalorder %s22, 8
      // Predicated region
      $region29: #{tpu_custom_call.1} parent=5 // pred_check
        %p235 = pneg %p234
      $region30: #{tpu_custom_call.1} parent=5 // pred_check_branch
        %237 = sbr.rel (%p235) target = $region32
      $region31: #{tpu_custom_call.1} parent=5 // pred_region
        // Predicated region
        $region33: #{tpu_custom_call.1} parent=31 // pred_check
          %p238 = pneg %p42
        $region34: #{tpu_custom_call.1} parent=31 // pred_check_branch
          %240 = sbr.rel (%p238) target = $region36
        $region35: #{tpu_custom_call.1} parent=31 // pred_region
          %s241 = sand.u32 %s32, 1
          %s242 = scalar_lea.sflag [#allocation3], %s241
          %s243 = sand.u32 %s32, 1
          %s244 = smul.addr %s243, 8
          %s245 = scalar_lea.vmem [#allocation2], %s244
          %s247 = ssub.s32 128, 128
          %248 = vsyncadd %s242, %s247
          %s249 = smul.addr %s22, 128
          %s250 = scalar_lea.hbm %s0, %s249
          %s252 = sshll.u32 %s245, 4
          %s253 = int_to_ptr.vmem [resolvable:$true] %s252
          %255 = dma.hbm_to_vmem [thread:$0]  %s250, 128, %s253, %s242
        $region36: #{tpu_custom_call.1} parent=31 // pred_fallthru
          _
      $region32: #{tpu_custom_call.1} parent=5 // pred_fallthru
        _
      %p256 = scmp.le.s32.totalorder 1, %s22
      %p257 = scmp.lt.s32.totalorder %s22, 9
      %p258 = pnand %p256, %p257
      %p259 = pneg %p258
      // Predicated region
      $region37: #{tpu_custom_call.1} parent=5 // pred_check
        _
      $region38: #{tpu_custom_call.1} parent=5 // pred_check_branch
        %261 = sbr.rel (%p258) target = $region40
      $region39: #{tpu_custom_call.1} parent=5 // pred_region
        %s262 = ssub.s32 %s22, 1
        %s263 = sand.u32 %s35, 1
        %s264 = scalar_lea.sflag [#allocation3], %s263
        %s265 = sand.u32 %s35, 1
        %s266 = smul.addr %s265, 8
        %s267 = scalar_lea.vmem [#allocation2], %s266
        // Predicated region
        $region41: #{tpu_custom_call.1} parent=39 // pred_check
          %p268 = pneg %p48
        $region42: #{tpu_custom_call.1} parent=39 // pred_check_branch
          %270 = sbr.rel (%p268) target = $region44
        $region43: #{tpu_custom_call.1} parent=39 // pred_region
          %271 = dma.done %s264, 128
        $region44: #{tpu_custom_call.1} parent=39 // pred_fallthru
          _
        // Predicated region
        $region45: #{tpu_custom_call.1} parent=39 // pred_check
          %p272 = pneg %p69
        $region46: #{tpu_custom_call.1} parent=39 // pred_check_branch
          %274 = sbr.rel (%p272) target = $region48
        $region47: #{tpu_custom_call.1} parent=39 // pred_region
          %275 = dma.done [#allocation6], 128
        $region48: #{tpu_custom_call.1} parent=39 // pred_fallthru
          _
        // Predicated region
        $region49: #{tpu_custom_call.1} parent=39 // pred_check
          %p276 = pneg %p90
        $region50: #{tpu_custom_call.1} parent=39 // pred_check_branch
          %278 = sbr.rel (%p276) target = $region52
        $region51: #{tpu_custom_call.1} parent=39 // pred_region
          %279 = dma.done [#allocation6], 512
        $region52: #{tpu_custom_call.1} parent=39 // pred_fallthru
          _
        // Predicated region
        $region53: #{tpu_custom_call.1} parent=39 // pred_check
          %p280 = pneg %p111
        $region54: #{tpu_custom_call.1} parent=39 // pred_check_branch
          %282 = sbr.rel (%p280) target = $region56
        $region55: #{tpu_custom_call.1} parent=39 // pred_region
          %283 = dma.done [#allocation9], 4096
        $region56: #{tpu_custom_call.1} parent=39 // pred_fallthru
          _
        %s284 = sand.u32 %s35, 1
        %s285 = scalar_lea.sflag [#allocation3], %s284
        %s286 = sand.u32 %s35, 1
        %s287 = smul.addr %s286, 8
        %s288 = scalar_lea.vmem [#allocation2], %s287
        %p289 = pneg %p48
        %p290 = pneg %p45
        %p291 = pneg %p69
        %p292 = pneg %p66
        %p293 = pneg %p90
        %p294 = pneg %p87
        %p295 = pneg %p111
        %p296 = pneg %p108
        %p297 = pneg %p132
        %p298 = pneg %p129
        %p299 = pneg %p158
        %p300 = pneg %p155
        %s301 = sand.u32 %s145, 1
        %s302 = scalar_lea.sflag [#allocation4], %s301
        %s303 = sand.u32 %s145, 1
        %s304 = smul.addr %s303, 8
        %s305 = scalar_lea.vmem [#allocation10], %s304
        %p306 = pneg %p179
        %p307 = pneg %p176
        %p308 = scmp.eq.s32.totalorder %s27, 0
        // Predicated region
        $region57: #{tpu_custom_call.1} parent=39 // pred_check
          %p309 = pneg %p308
        $region58: #{tpu_custom_call.1} parent=39 // pred_check_branch
          %311 = sbr.rel (%p309) target = $region60
        $region59: #{tpu_custom_call.1} parent=39 // pred_region
          %v312 = vld [vmem:[#allocation5] sm:$0xff]
          %313 = vst [vmem:[#allocation11] sm:$0xff] %v312
        $region60: #{tpu_custom_call.1} parent=39 // pred_fallthru
          _
        %v314 = vld [vmem:[%s267] sm:$0xff]
        %v315 = vld [vmem:[#allocation11] sm:$0xff]
        %v316 = vld [vmem:[#allocation7] sm:$0xff]
        %v317 = vld [vmem:[#allocation7 + $0x8] sm:$0xff]
        %v318 = vld [vmem:[#allocation7 + $0x10] sm:$0xff]
        %v319 = vld [vmem:[#allocation7 + $0x18] sm:$0xff]
        %v320 = vld [vmem:[#allocation8] sm:$0xff]
        %v321 = vld [vmem:[#allocation8 + $0x8] sm:$0xff]
        %v322 = vld [vmem:[#allocation8 + $0x10] sm:$0xff]
        %v323 = vld [vmem:[#allocation8 + $0x18] sm:$0xff]
        %v324 = vld [vmem:[#allocation8 + $0x20] sm:$0xff]
        %v325 = vld [vmem:[#allocation8 + $0x28] sm:$0xff]
        %v326 = vld [vmem:[#allocation8 + $0x30] sm:$0xff]
        %v327 = vld [vmem:[#allocation8 + $0x38] sm:$0xff]
        %v328 = vld [vmem:[#allocation8 + $0x40] sm:$0xff]
        %v329 = vld [vmem:[#allocation8 + $0x48] sm:$0xff]
        %v330 = vld [vmem:[#allocation8 + $0x50] sm:$0xff]
        %v331 = vld [vmem:[#allocation8 + $0x58] sm:$0xff]
        %v332 = vld [vmem:[#allocation8 + $0x60] sm:$0xff]
        %v333 = vld [vmem:[#allocation8 + $0x68] sm:$0xff]
        %v334 = vld [vmem:[#allocation8 + $0x70] sm:$0xff]
        %v335 = vld [vmem:[#allocation8 + $0x78] sm:$0xff]
        %v336 = vld [vmem:[#allocation8 + $0x80] sm:$0xff]
        %v337 = vld [vmem:[#allocation8 + $0x88] sm:$0xff]
        %v338 = vld [vmem:[#allocation8 + $0x90] sm:$0xff]
        %v339 = vld [vmem:[#allocation8 + $0x98] sm:$0xff]
        %v340 = vld [vmem:[#allocation8 + $0xa0] sm:$0xff]
        %v341 = vld [vmem:[#allocation8 + $0xa8] sm:$0xff]
        %v342 = vld [vmem:[#allocation8 + $0xb0] sm:$0xff]
        %v343 = vld [vmem:[#allocation8 + $0xb8] sm:$0xff]
        %v344 = vld [vmem:[#allocation8 + $0xc0] sm:$0xff]
        %v345 = vld [vmem:[#allocation8 + $0xc8] sm:$0xff]
        %v346 = vld [vmem:[#allocation8 + $0xd0] sm:$0xff]
        %v347 = vld [vmem:[#allocation8 + $0xd8] sm:$0xff]
        %v348 = vld [vmem:[#allocation8 + $0xe0] sm:$0xff]
        %v349 = vld [vmem:[#allocation8 + $0xe8] sm:$0xff]
        %v350 = vld [vmem:[#allocation8 + $0xf0] sm:$0xff]
        %v351 = vld [vmem:[#allocation8 + $0xf8] sm:$0xff]
        %352 = vmatprep.subr.mxu0 %v351
        %353 = vmatpush1.msra.mxu0 %v350
        %354 = vmatprep.subr.mxu0 %v349
        %355 = vmatpush1.msra.mxu0 %v348
        %356 = vmatprep.subr.mxu0 %v347
        %357 = vmatpush1.msra.mxu0 %v346
        %358 = vmatprep.subr.mxu0 %v345
        %359 = vmatpush1.msra.mxu0 %v344
        %360 = vmatprep.subr.mxu0 %v343
        %361 = vmatpush1.msra.mxu0 %v342
        %362 = vmatprep.subr.mxu0 %v341
        %363 = vmatpush1.msra.mxu0 %v340
        %364 = vmatprep.subr.mxu0 %v339
        %365 = vmatpush1.msra.mxu0 %v338
        %366 = vmatprep.subr.mxu0 %v337
        %367 = vmatpush1.msra.mxu0 %v336
        %368 = vmatprep.subr.mxu0 %v335
        %369 = vmatpush1.msra.mxu0 %v334
        %370 = vmatprep.subr.mxu0 %v333
        %371 = vmatpush1.msra.mxu0 %v332
        %372 = vmatprep.subr.mxu0 %v331
        %373 = vmatpush1.msra.mxu0 %v330
        %374 = vmatprep.subr.mxu0 %v329
        %375 = vmatpush1.msra.mxu0 %v328
        %376 = vmatprep.subr.mxu0 %v327
        %377 = vmatpush1.msra.mxu0 %v326
        %378 = vmatprep.subr.mxu0 %v325
        %379 = vmatpush1.msra.mxu0 %v324
        %380 = vmatprep.subr.mxu0 %v323
        %381 = vmatpush1.msra.mxu0 %v322
        %382 = vmatprep.subr.mxu0 %v321
        %383 = vmatpush1.msra.mxu0 %v320
        %384 = vmatprep.subr.mxu0 0.0
        %385 = vmatpush2.msra.mxu0 0.0
        %386 = vmatprep.subr.mxu0 0.0
        %387 = vmatpush2.msra.mxu0 0.0
        %388 = vmatprep.subr.mxu0 0.0
        %389 = vmatpush2.msra.mxu0 0.0
        %390 = vmatprep.subr.mxu0 0.0
        %391 = vmatpush2.msra.mxu0 0.0
        %392 = vmatprep.subr.mxu0 0.0
        %393 = vmatpush2.msra.mxu0 0.0
        %394 = vmatprep.subr.mxu0 0.0
        %395 = vmatpush2.msra.mxu0 0.0
        %396 = vmatprep.subr.mxu0 0.0
        %397 = vmatpush2.msra.mxu0 0.0
        %398 = vmatprep.subr.mxu0 0.0
        %399 = vmatpush2.msra.mxu0 0.0
        %400 = vmatprep.subr.mxu0 0.0
        %401 = vmatpush2.msra.mxu0 0.0
        %402 = vmatprep.subr.mxu0 0.0
        %403 = vmatpush2.msra.mxu0 0.0
        %404 = vmatprep.subr.mxu0 0.0
        %405 = vmatpush2.msra.mxu0 0.0
        %406 = vmatprep.subr.mxu0 0.0
        %407 = vmatpush2.msra.mxu0 0.0
        %408 = vmatprep.subr.mxu0 0.0
        %409 = vmatpush2.msra.mxu0 0.0
        %410 = vmatprep.subr.mxu0 0.0
        %411 = vmatpush2.msra.mxu0 0.0
        %412 = vmatprep.subr.mxu0 0.0
        %413 = vmatpush2.msra.mxu0 0.0
        %414 = vmatprep.subr.mxu0 0.0
        %415 = vmatpush2.msra.mxu0 0.0
        %416 = vmatprep.mubr.f32.mxu0 0.0
        %417 = vmatmul.mubr.f32.gmra.mxu0 %v315
        %v418 = vpop.f32.mrf.mxu0
        %v419 = vadd.f32 0.0, %v418
        %v420 = vpop.f32.mrf.mxu0
        %v421 = vadd.f32 0.0, %v420
        %422 = vdwg.mxu0
        %vm423 = vcmask 130048
        %v425 = vsel %vm423, %v314, 0
        %427 = vmatprep.subr.mxu0 0.0
        %428 = vmatpush1.msra.mxu0 0.0
        %429 = vmatprep.subr.mxu0 0.0
        %430 = vmatpush1.msra.mxu0 0.0
        %431 = vmatprep.subr.mxu0 0.0
        %432 = vmatpush1.msra.mxu0 0.0
        %433 = vmatprep.subr.mxu0 0.0
        %434 = vmatpush1.msra.mxu0 0.0
        %435 = vmatprep.subr.mxu0 0.0
        %436 = vmatpush1.msra.mxu0 0.0
        %437 = vmatprep.subr.mxu0 0.0
        %438 = vmatpush1.msra.mxu0 0.0
        %439 = vmatprep.subr.mxu0 0.0
        %440 = vmatpush1.msra.mxu0 0.0
        %441 = vmatprep.subr.mxu0 0.0
        %442 = vmatpush1.msra.mxu0 0.0
        %443 = vmatprep.subr.mxu0 0.0
        %444 = vmatpush1.msra.mxu0 0.0
        %445 = vmatprep.subr.mxu0 0.0
        %446 = vmatpush1.msra.mxu0 0.0
        %447 = vmatprep.subr.mxu0 0.0
        %448 = vmatpush1.msra.mxu0 0.0
        %449 = vmatprep.subr.mxu0 0.0
        %450 = vmatpush1.msra.mxu0 0.0
        %451 = vmatprep.subr.mxu0 0.0
        %452 = vmatpush1.msra.mxu0 0.0
        %453 = vmatprep.subr.mxu0 0.0
        %454 = vmatpush1.msra.mxu0 0.0
        %455 = vmatprep.subr.mxu0 %v319
        %456 = vmatpush1.msra.mxu0 %v318
        %457 = vmatprep.subr.mxu0 %v317
        %458 = vmatpush1.msra.mxu0 %v316
        %459 = vmatprep.subr.mxu0 0.0
        %460 = vmatpush2.msra.mxu0 0.0
        %461 = vmatprep.subr.mxu0 0.0
        %462 = vmatpush2.msra.mxu0 0.0
        %463 = vmatprep.subr.mxu0 0.0
        %464 = vmatpush2.msra.mxu0 0.0
        %465 = vmatprep.subr.mxu0 0.0
        %466 = vmatpush2.msra.mxu0 0.0
        %467 = vmatprep.subr.mxu0 0.0
        %468 = vmatpush2.msra.mxu0 0.0
        %469 = vmatprep.subr.mxu0 0.0
        %470 = vmatpush2.msra.mxu0 0.0
        %471 = vmatprep.subr.mxu0 0.0
        %472 = vmatpush2.msra.mxu0 0.0
        %473 = vmatprep.subr.mxu0 0.0
        %474 = vmatpush2.msra.mxu0 0.0
        %475 = vmatprep.subr.mxu0 0.0
        %476 = vmatpush2.msra.mxu0 0.0
        %477 = vmatprep.subr.mxu0 0.0
        %478 = vmatpush2.msra.mxu0 0.0
        %479 = vmatprep.subr.mxu0 0.0
        %480 = vmatpush2.msra.mxu0 0.0
        %481 = vmatprep.subr.mxu0 0.0
        %482 = vmatpush2.msra.mxu0 0.0
        %483 = vmatprep.subr.mxu0 0.0
        %484 = vmatpush2.msra.mxu0 0.0
        %485 = vmatprep.subr.mxu0 0.0
        %486 = vmatpush2.msra.mxu0 0.0
        %487 = vmatprep.subr.mxu0 0.0
        %488 = vmatpush2.msra.mxu0 0.0
        %489 = vmatprep.subr.mxu0 0.0
        %490 = vmatpush2.msra.mxu0 0.0
        %491 = vmatprep.mubr.f32.mxu0 0.0
        %492 = vmatmul.mubr.f32.gmra.mxu0 %v425
        %v493 = vpop.f32.mrf.mxu0
        %v494 = vadd.f32 %v419, %v493
        %v495 = vpop.f32.mrf.mxu0
        %v496 = vadd.f32 %v421, %v495
        %497 = vdwg.mxu0
        %v498 = vld [vmem:[%s4] sm:$0x3]
        %v500 = vlaneseq
        %v501 = vshrl.u32 %v500, 7
        %v502 = vsub.s32 0, %v501
        %v503 = vrot.slane %v498, %v502
        %v504 = vlaneseq
        %v505 = vshrl.u32 %v504, 7
        %v506 = vsub.s32 1, %v505
        %v507 = vrot.slane %v498, %v506
        %v510 = vadd.f32 %v494, %v503
        %v511 = vadd.f32 %v496, %v507
        %512 = vmax.xlane.f32.xlu0 %v511
        %v513 = vpop.xlane.xlu0 %512
        %v514 = vsub.f32 %v511, %v513
        %v515 = vmul.f32 %v514, 1.442695
        %v516 = vpow.pop %v515
        %517 = vadd.xlane.f32.xlu0 %v516
        %v518 = vpop.xlane.xlu0 %517
        %v519 = vlog2.pop %v518
        %v520 = vmul.f32 %v519, 0.6931472
        %v521 = vsub.f32 %v514, %v520
        %522 = vst [vmem:[%s305] sm:$0xff] %v521
        %523 = vst [vmem:[#allocation11] sm:$0xff] %v510
        %s524 = sand.u32 %s145, 1
        %s525 = scalar_lea.sflag [#allocation4], %s524
        %s526 = sand.u32 %s145, 1
        %s527 = smul.addr %s526, 8
        %s528 = scalar_lea.vmem [#allocation10], %s527
        // Predicated region
        $region61: #{tpu_custom_call.1} parent=39 // pred_check
          %p529 = pneg %p155
        $region62: #{tpu_custom_call.1} parent=39 // pred_check_branch
          %531 = sbr.rel (%p529) target = $region64
        $region63: #{tpu_custom_call.1} parent=39 // pred_region
          %s533 = ssub.s32 128, 128
          %534 = vsyncadd %s525, %s533
          %s535 = smul.addr %s27, 128
          %s536 = scalar_lea.hbm %s5, %s535
          %s538 = sshll.u32 %s528, 4
          %s539 = int_to_ptr.vmem [resolvable:$true] %s538
          %541 = dma.vmem_to_hbm [thread:$0]  %s539, 128, %s536, %s525
        $region64: #{tpu_custom_call.1} parent=39 // pred_fallthru
          _
        // Predicated region
        $region65: #{tpu_custom_call.1} parent=39 // pred_check
          %p542 = pneg %p176
        $region66: #{tpu_custom_call.1} parent=39 // pred_check_branch
          %544 = sbr.rel (%p542) target = $region68
        $region67: #{tpu_custom_call.1} parent=39 // pred_region
          %s546 = ssub.s32 128, 128
          %547 = vsyncadd [#allocation12], %s546
          %s549 = sshll.u32 [#allocation11], 4
          %s550 = int_to_ptr.vmem [resolvable:$true] %s549
          %552 = dma.vmem_to_hbm [thread:$0]  %s550, 128, %s6, [#allocation12]
        $region68: #{tpu_custom_call.1} parent=39 // pred_fallthru
          _
        // Predicated region
        $region69: #{tpu_custom_call.1} parent=39 // pred_check
          %p553 = pneg %p176
        $region70: #{tpu_custom_call.1} parent=39 // pred_check_branch
          %555 = sbr.rel (%p553) target = $region72
        $region71: #{tpu_custom_call.1} parent=39 // pred_region
          %556 = dma.done [#allocation12], 128
        $region72: #{tpu_custom_call.1} parent=39 // pred_fallthru
          _
      $region40: #{tpu_custom_call.1} parent=5 // pred_fallthru
        _
      %p557 = scmp.le.s32.totalorder 2, %s22
      // Predicated region
      $region73: #{tpu_custom_call.1} parent=5 // pred_check
        %p558 = pneg %p557
      $region74: #{tpu_custom_call.1} parent=5 // pred_check_branch
        %560 = sbr.rel (%p558) target = $region76
      $region75: #{tpu_custom_call.1} parent=5 // pred_region
        %s561 = ssub.s32 %s22, 2
        // Predicated region
        $region77: #{tpu_custom_call.1} parent=75 // pred_check
          %p562 = pneg %p161
        $region78: #{tpu_custom_call.1} parent=75 // pred_check_branch
          %564 = sbr.rel (%p562) target = $region80
        $region79: #{tpu_custom_call.1} parent=75 // pred_region
          %s565 = sand.u32 %s146, 1
          %s566 = scalar_lea.sflag [#allocation4], %s565
          %s567 = sand.u32 %s146, 1
          %s568 = smul.addr %s567, 8
          %s569 = scalar_lea.vmem [#allocation10], %s568
          %570 = dma.done %s566, 128
        $region80: #{tpu_custom_call.1} parent=75 // pred_fallthru
          _
      $region76: #{tpu_custom_call.1} parent=5 // pred_fallthru
        _
    $region6: #{tpu_custom_call.1} parent=1 // loop_footer
      %s26 = sadd.s32 1, %s22
    $region7: #{tpu_custom_call.1} parent=1 // loop_footer_branch
      %21 = sbr.rel target = $region3
    $region8: #{tpu_custom_call.1} parent=1 // loop_exit
      _
    %571 = vsyncpa [#allocation3], 1
    %s572 = scalar_lea.sflag [#allocation3], 1
    %573 = vsyncpa %s572, 1
    %574 = vsyncpa [#allocation6], 1
    %575 = vsyncpa [#allocation9], 1
    %576 = vsyncpa [#allocation4], 1
    %s577 = scalar_lea.sflag [#allocation4], 1
    %578 = vsyncpa %s577, 1
    %579 = vsyncpa [#allocation12], 1

</llo_original>
